<compile_context>
chip_gen: v7x
topology: tpu7x:2x2x1
jax: 0.10.0
libtpu: 0.0.40
codegen_flags: <defaults>
</compile_context>

<pallas_src>
import jax
import jax.numpy as jnp
from jax.experimental import pallas as pl
from jax.experimental.pallas import tpu as pltpu


def bert_pooler_kernel(x_ref, w_ref, b_ref, o_ref):
    # x_ref: [TB, H] first-token tile (VMEM-resident across the O axis),
    # w_ref: [H, TN] weight tile, b_ref: [1, TN] bias tile, o_ref: [TB, TN].
    acc = jnp.dot(x_ref[...], w_ref[...],
                  preferred_element_type=jnp.float32)   # MXU matmul, f32 acc
    acc = acc + b_ref[...].astype(jnp.float32)          # bias broadcast over batch
    # NOTE: BertPooler_D.forward never applies Tanh, so no activation here.
    o_ref[...] = acc.astype(o_ref.dtype)


def _pick_o_tile(O, target=512):
    """Output-lane tile: largest divisor of O that is a multiple of 128 and
    <= target; prefer >= 2 blocks so v7x's two TensorCores both get work.
    Falls back to the full dim for small / awkward O (always legal)."""
    if O <= target:
        # Split in two when the halves stay 128-lane aligned (megacore split),
        # otherwise keep the whole thing as one cheap block.
        return O // 2 if (O % 256 == 0) else O
    for tn in range(target, 127, -1):
        if O % tn == 0 and tn % 128 == 0:
            return tn
    for tn in range(target, 0, -1):
        if O % tn == 0:
            return tn
    return O


def bert_pooler(hidden_states, weight, bias, *, tn_target=512,
                vmem_budget_bytes=48 * 1024 * 1024):
    """hidden_states: [B, S, H]; weight: [H, O] (pre-transposed from PyTorch's
    [O, H]); bias: [O]. Returns pooled output [B, O] (no tanh: forward() never
    applies it). bf16 inputs are supported transparently (f32 accumulate); if
    feeding bf16, a batch that is a multiple of 16 tiles most efficiently."""
    B, S, H = hidden_states.shape
    O = weight.shape[1]

    # CLS slice in the wrapper; allow_input_fusion below lets XLA fuse this
    # slice into the pallas_call operand (no extra B*H HBM round-trip).
    first_token = hidden_states[:, 0, :]                 # [B, H]
    bias2d = bias.reshape(1, O)

    # --- Tile selection -----------------------------------------------------
    # The kernel is HBM-BW / grid-step-overhead bound at pooler sizes, so keep
    # the activations resident and stream wide weight tiles.
    TN = _pick_o_tile(O, tn_target)
    TB = B                                               # x resident by default

    def vmem_estimate(tb, tn):
        # Inputs and outputs are double-buffered by the BlockSpec pipeline.
        a = first_token.dtype.itemsize
        w = weight.dtype.itemsize
        o = hidden_states.dtype.itemsize
        return 2 * (tb * H * a + H * tn * w + tn * w + tb * tn * o)

    # VMEM guard (v7x has only 64 MiB physical): shrink TN first (weights are
    # the big consumer), then the batch tile. Halving preserves divisibility.
    while vmem_estimate(TB, TN) > vmem_budget_bytes and TN % 2 == 0 and TN > 128:
        TN //= 2
    while vmem_estimate(TB, TN) > vmem_budget_bytes and TB % 2 == 0 and TB > 128:
        TB //= 2

    nB, nO = B // TB, O // TN
    est = vmem_estimate(TB, TN)
    vmem_limit = min(64 * 1024 * 1024, max(32 * 1024 * 1024, int(est * 1.25)))

    return pl.pallas_call(
        bert_pooler_kernel,
        out_shape=jax.ShapeDtypeStruct((B, O), hidden_states.dtype),
        grid_spec=pltpu.PrefetchScalarGridSpec(
            num_scalar_prefetch=0,
            # O is the innermost axis: the x block index depends only on i, so
            # with nB == 1 (the common case) the [B, H] activations are DMA'd
            # exactly once and stay resident while weight/output tiles stream.
            grid=(nB, nO),
            in_specs=[
                pl.BlockSpec((TB, H), lambda i, j: (i, 0)),   # first-token tile
                pl.BlockSpec((H, TN), lambda i, j: (0, j)),   # weight tile
                pl.BlockSpec((1, TN), lambda i, j: (0, j)),   # bias tile
            ],
            out_specs=pl.BlockSpec((TB, TN), lambda i, j: (i, j)),
        ),
        compiler_params=pltpu.CompilerParams(
            # Both axes independent -> megacore shards them across v7x's two
            # TensorCores; neutral on v5e/v6e.
            dimension_semantics=("parallel", "parallel"),
            # Fuse the CLS-slice producer into the kernel's first operand.
            allow_input_fusion=[True, False, False],
            vmem_limit_bytes=vmem_limit,
        ),
    )(first_token, weight, bias2d)


if __name__ == "__main__":
    # Small shapes consistent with the module: batch=2, seq=8, hidden=32, output=32.
    B, S, H, O = 2, 8, 32, 32

    key = jax.random.PRNGKey(0)
    k_h, k_w, k_b = jax.random.split(key, 3)

    hidden_states = jax.random.normal(k_h, (B, S, H), dtype=jnp.float32)
    # PyTorch stores the Linear weight as [O, H]; we keep it pre-transposed as [H, O].
    weight = jax.random.normal(k_w, (H, O), dtype=jnp.float32) * 0.02
    bias = jax.random.normal(k_b, (O,), dtype=jnp.float32) * 0.02

    out = jax.block_until_ready(bert_pooler(hidden_states, weight, bias))

    # Reference check in plain JAX (no tanh: forward() never applies it).
    ref = hidden_states[:, 0, :] @ weight + bias
    assert out.shape == (B, O)
    assert jnp.allclose(out, ref, atol=1e-5, rtol=1e-5)

    print("KERNEL_OK")
</pallas_src>

<mosaic_0001>
module attributes {stable_mosaic.version = 11 : i64} {
  func.func @bert_pooler_kernel(%arg0: i32, %arg1: i32, %arg2: memref<2x32xf32, #tpu.memory_space<vmem>>, %arg3: memref<32x32xf32, #tpu.memory_space<vmem>>, %arg4: memref<1x32xf32, #tpu.memory_space<vmem>>, %arg5: memref<2x32xf32, #tpu.memory_space<vmem>>) attributes {dimension_semantics = [#tpu.dimension_semantics<parallel>, #tpu.dimension_semantics<parallel>], iteration_bounds = array<i64: 1, 1>, scalar_prefetch = 0 : i64, scratch_operands = 0 : i64, tpu.core_type = #tpu.core_type<tc>, window_params = [{transform_indices = @transform_0, window_bounds = array<i64: 2, 32>}, {transform_indices = @transform_1, window_bounds = array<i64: 32, 32>}, {transform_indices = @transform_2, window_bounds = array<i64: 1, 32>}, {transform_indices = @transform_3, window_bounds = array<i64: 2, 32>}]} {
    %c0 = arith.constant 0 : index
    %c0_0 = arith.constant 0 : index
    %0 = vector.load %arg2[%c0, %c0_0] : memref<2x32xf32, #tpu.memory_space<vmem>>, vector<2x32xf32>
    %c0_1 = arith.constant 0 : index
    %c0_2 = arith.constant 0 : index
    %1 = vector.load %arg3[%c0_1, %c0_2] : memref<32x32xf32, #tpu.memory_space<vmem>>, vector<32x32xf32>
    %cst = arith.constant dense<0.000000e+00> : vector<2x32xf32>
    %2 = tpu.matmul %0, %1, %cst {dimension_numbers = #tpu.dot_dimension_numbers<[1], [0], [0], [1], [0, 0, 1, 1], [], []>} : vector<2x32xf32>, vector<32x32xf32>, vector<2x32xf32> -> vector<2x32xf32>
    %c0_3 = arith.constant 0 : index
    %c0_4 = arith.constant 0 : index
    %3 = vector.load %arg4[%c0_3, %c0_4] : memref<1x32xf32, #tpu.memory_space<vmem>>, vector<1x32xf32>
    %4 = vector.broadcast %3 : vector<1x32xf32> to vector<2x32xf32>
    %5 = arith.addf %2, %4 : vector<2x32xf32>
    %c0_5 = arith.constant 0 : index
    %c0_6 = arith.constant 0 : index
    %6 = vector.load %arg5[%c0_5, %c0_6] : memref<2x32xf32, #tpu.memory_space<vmem>>, vector<2x32xf32>
    tpu.vector_store %arg5[%c0_5, %c0_6], %5 {strides = array<i32>} : memref<2x32xf32, #tpu.memory_space<vmem>>, vector<2x32xf32>,
    return
  }
  func.func @transform_0(%arg0: i32, %arg1: i32) -> (i32, i32) {
    %c0_i32 = arith.constant 0 : i32
    %c0_i32_0 = arith.constant 0 : i32
    return %arg0, %c0_i32 : i32, i32
  }
  func.func @transform_1(%arg0: i32, %arg1: i32) -> (i32, i32) {
    %c0_i32 = arith.constant 0 : i32
    %c0_i32_0 = arith.constant 0 : i32
    return %c0_i32, %arg1 : i32, i32
  }
  func.func @transform_2(%arg0: i32, %arg1: i32) -> (i32, i32) {
    %c0_i32 = arith.constant 0 : i32
    %c0_i32_0 = arith.constant 0 : i32
    return %c0_i32, %arg1 : i32, i32
  }
  func.func @transform_3(%arg0: i32, %arg1: i32) -> (i32, i32) {
    %c0_i32 = arith.constant 0 : i32
    return %arg0, %arg1 : i32, i32
  }
}

</mosaic_0001>

<llo_original>
// kernel: tpu_custom_call.1
$region0: #{tpu_custom_call.1}
  #allocation0 [shape = 'u32[]', space=smem, size = 0x4, offset = 0x4, fixed_abs, tag = 'smem constant byte address 0x4 - core index']
  #allocation1 [shape = 'u32[144,128]{1,0:T(1,128)}', space=vmem, size = 0x12000, scoped, tag = 'internal scratch']
  %s0 = inlined_call_operand.hbm [shape: f32[2,32], index: 0, kind: input, shape index: {}]
  %s1 = inlined_call_operand.hbm [shape: f32[32,32], index: 1, kind: input, shape index: {}]
  %s2 = inlined_call_operand.vmem [shape: f32[1,32], index: 2, kind: input, shape index: {}]
  %s3 = inlined_call_operand.hbm [shape: f32[2,32], index: 3, kind: output, shape index: {}]
  %s4 = sld [smem:[#allocation0]]
  $region30: #{tpu_custom_call.1} parent=0
    _
  %s6 = ssub.s32 1, %s4
  %s7 = scalar_select 0, %s6, %s4
  $region1: #{tpu_custom_call.1} parent=0
    #allocation2 [shape = 'u8[1024]{0}', space=vmem, size = 0x400, scoped, tag = 'input window, operand 0, single buffered']
    #allocation3 [shape = 's32[1]{0}', space=sflag, size = 0x4, scoped, tag = 'scoped memory for tpu_custom_call.1']
    #allocation4 [shape = 's32[1]{0}', space=sflag, size = 0x4, scoped, tag = 'scoped memory for tpu_custom_call.1']
    #allocation5 [shape = 'u8[16384]{0}', space=vmem, size = 0x4000, scoped, tag = 'input window, operand 1, single buffered']
    #allocation6 [shape = 's32[1]{0}', space=sflag, size = 0x4, scoped, tag = 'scoped memory for tpu_custom_call.1']
    #allocation7 [shape = 'u8[1024]{0}', space=vmem, size = 0x400, scoped, tag = 'output window, operand 0, single buffered']
    %8 = vsyncpa [#allocation3], 0
    %9 = vsyncpa [#allocation6], 0
    %10 = vsyncpa [#allocation4], 0
    // Predicated region
    $region2: #{tpu_custom_call.1} parent=1 // pred_check
      _
    $region3: #{tpu_custom_call.1} parent=1 // pred_check_branch
      %12 = sbr.rel (0) target = $region5
    $region4: #{tpu_custom_call.1} parent=1 // pred_region
      %s14 = ssub.s32 32, 32
      %15 = vsyncadd [#allocation3], %s14
      %s17 = sshll.u32 [#allocation2], 4
      %s18 = int_to_ptr.vmem [resolvable:$true] %s17
      %20 = dma.hbm_to_vmem [thread:$0]  %s0, 32, %s18, [#allocation3]
    $region5: #{tpu_custom_call.1} parent=1 // pred_fallthru
      _
    // Predicated region
    $region6: #{tpu_custom_call.1} parent=1 // pred_check
      _
    $region7: #{tpu_custom_call.1} parent=1 // pred_check_branch
      %22 = sbr.rel (0) target = $region9
    $region8: #{tpu_custom_call.1} parent=1 // pred_region
      %s24 = ssub.s32 512, 512
      %25 = vsyncadd [#allocation6], %s24
      %s26 = sshll.u32 [#allocation5], 4
      %s27 = int_to_ptr.vmem [resolvable:$true] %s26
      %32 = dma.hbm_to_vmem [thread:$0]  %s1, 512, %s27, [#allocation6], 128, 128, 8
    $region9: #{tpu_custom_call.1} parent=1 // pred_fallthru
      _
    // Predicated region
    $region10: #{tpu_custom_call.1} parent=1 // pred_check
      _
    $region11: #{tpu_custom_call.1} parent=1 // pred_check_branch
      %34 = sbr.rel (0) target = $region13
    $region12: #{tpu_custom_call.1} parent=1 // pred_region
      _
    $region13: #{tpu_custom_call.1} parent=1 // pred_fallthru
      _
    // Predicated region
    $region14: #{tpu_custom_call.1} parent=1 // pred_check
      _
    $region15: #{tpu_custom_call.1} parent=1 // pred_check_branch
      %36 = sbr.rel (0) target = $region17
    $region16: #{tpu_custom_call.1} parent=1 // pred_region
      %37 = dma.done [#allocation3], 32
    $region17: #{tpu_custom_call.1} parent=1 // pred_fallthru
      _
    // Predicated region
    $region18: #{tpu_custom_call.1} parent=1 // pred_check
      _
    $region19: #{tpu_custom_call.1} parent=1 // pred_check_branch
      %39 = sbr.rel (0) target = $region21
    $region20: #{tpu_custom_call.1} parent=1 // pred_region
      %40 = dma.done [#allocation6], 512
    $region21: #{tpu_custom_call.1} parent=1 // pred_fallthru
      _
    %v41 = vld [vmem:[#allocation2] sm:$0x3]
    %v42 = vld [vmem:[#allocation5] sm:$0xff]
    %v43 = vld [vmem:[#allocation5 + $0x8] sm:$0xff]
    %v44 = vld [vmem:[#allocation5 + $0x10] sm:$0xff]
    %v45 = vld [vmem:[#allocation5 + $0x18] sm:$0xff]
    %v46 = vld [vmem:[%s2] sm:$0x1]
    %v48 = vlaneseq
    %v49 = vshrl.u32 %v48, 7
    %v50 = vsub.s32 0, %v49
    %v51 = vrot.slane %v46, %v50
    %vm53 = vcmask 261120
    %v55 = vsel %vm53, %v41, 0
    %57 = vmatprep.subr.mxu0 0.0
    %58 = vmatpush1.msra.mxu0 %v42
    %59 = vmatprep.subr.mxu0 0.0
    %60 = vmatpush1.msra.mxu0 %v43
    %61 = vmatprep.subr.mxu0 0.0
    %62 = vmatpush1.msra.mxu0 %v44
    %63 = vmatprep.subr.mxu0 0.0
    %64 = vmatpush1.msra.mxu0 %v45
    %65 = vmatprep.subr.mxu0 0.0
    %66 = vmatpush1.msra.mxu0 0.0
    %67 = vmatprep.subr.mxu0 0.0
    %68 = vmatpush1.msra.mxu0 0.0
    %69 = vmatprep.subr.mxu0 0.0
    %70 = vmatpush1.msra.mxu0 0.0
    %71 = vmatprep.subr.mxu0 0.0
    %72 = vmatpush1.msra.mxu0 0.0
    %73 = vmatprep.subr.mxu0 0.0
    %74 = vmatpush1.msra.mxu0 0.0
    %75 = vmatprep.subr.mxu0 0.0
    %76 = vmatpush1.msra.mxu0 0.0
    %77 = vmatprep.subr.mxu0 0.0
    %78 = vmatpush1.msra.mxu0 0.0
    %79 = vmatprep.subr.mxu0 0.0
    %80 = vmatpush1.msra.mxu0 0.0
    %81 = vmatprep.subr.mxu0 0.0
    %82 = vmatpush1.msra.mxu0 0.0
    %83 = vmatprep.subr.mxu0 0.0
    %84 = vmatpush1.msra.mxu0 0.0
    %85 = vmatprep.subr.mxu0 0.0
    %86 = vmatpush1.msra.mxu0 0.0
    %87 = vmatprep.subr.mxu0 0.0
    %88 = vmatpush1.msra.mxu0 0.0
    %89 = vmatprep.subr.mxu0 0.0
    %90 = vmatpush1.msra.mxu0 0.0
    %91 = vmatprep.subr.mxu0 0.0
    %92 = vmatpush1.msra.mxu0 0.0
    %93 = vmatprep.subr.mxu0 0.0
    %94 = vmatpush1.msra.mxu0 0.0
    %95 = vmatprep.subr.mxu0 0.0
    %96 = vmatpush1.msra.mxu0 0.0
    %97 = vmatprep.subr.mxu0 0.0
    %98 = vmatpush1.msra.mxu0 0.0
    %99 = vmatprep.subr.mxu0 0.0
    %100 = vmatpush1.msra.mxu0 0.0
    %101 = vmatprep.subr.mxu0 0.0
    %102 = vmatpush1.msra.mxu0 0.0
    %103 = vmatprep.subr.mxu0 0.0
    %104 = vmatpush1.msra.mxu0 0.0
    %105 = vmatprep.subr.mxu0 0.0
    %106 = vmatpush1.msra.mxu0 0.0
    %107 = vmatprep.subr.mxu0 0.0
    %108 = vmatpush1.msra.mxu0 0.0
    %109 = vmatprep.subr.mxu0 0.0
    %110 = vmatpush1.msra.mxu0 0.0
    %111 = vmatprep.subr.mxu0 0.0
    %112 = vmatpush1.msra.mxu0 0.0
    %113 = vmatprep.subr.mxu0 0.0
    %114 = vmatpush1.msra.mxu0 0.0
    %115 = vmatprep.subr.mxu0 0.0
    %116 = vmatpush1.msra.mxu0 0.0
    %117 = vmatprep.subr.mxu0 0.0
    %118 = vmatpush1.msra.mxu0 0.0
    %119 = vmatprep.subr.mxu0 0.0
    %120 = vmatpush1.msra.mxu0 0.0
    %121 = vmatprep.mubr.f32.mxu0 0.0
    %122 = vmatmul.mubr.f32.gmra.mrb[0].mxu0 %v55
    %v123 = vpop.f32.mrb[0].mxu0
    %v124 = vadd.f32 %v51, %v123
    %v125 = vpop.f32.mrb[0].mxu0
    %126 = vdwg.mxu0
    %vm127 = vcmask 254976
    %128 = vst.msk [vmem:[#allocation7] sm:$0x3] %vm127, %v124
    // Predicated region
    $region22: #{tpu_custom_call.1} parent=1 // pred_check
      _
    $region23: #{tpu_custom_call.1} parent=1 // pred_check_branch
      %130 = sbr.rel (0) target = $region25
    $region24: #{tpu_custom_call.1} parent=1 // pred_region
      %s132 = ssub.s32 32, 32
      %133 = vsyncadd [#allocation4], %s132
      %s135 = sshll.u32 [#allocation7], 4
      %s136 = int_to_ptr.vmem [resolvable:$true] %s135
      %138 = dma.vmem_to_hbm [thread:$0]  %s136, 32, %s3, [#allocation4]
    $region25: #{tpu_custom_call.1} parent=1 // pred_fallthru
      _
    // Predicated region
    $region26: #{tpu_custom_call.1} parent=1 // pred_check
      _
    $region27: #{tpu_custom_call.1} parent=1 // pred_check_branch
      %140 = sbr.rel (0) target = $region29
    $region28: #{tpu_custom_call.1} parent=1 // pred_region
      %141 = dma.done [#allocation4], 32
    $region29: #{tpu_custom_call.1} parent=1 // pred_fallthru
      _
    %142 = vsyncpa [#allocation3], 1
    %143 = vsyncpa [#allocation6], 1
    %144 = vsyncpa [#allocation4], 1

</llo_original>
